<compile_context>
chip_gen: v7x
topology: tpu7x:2x2x1
jax: 0.10.0
libtpu: 0.0.40
codegen_flags: <defaults>
</compile_context>

<pallas_src>
import functools

import jax
import jax.numpy as jnp
from jax.experimental import pallas as pl
from jax.experimental.pallas import tpu as pltpu

EPS = 1e-5  # torch.nn.BatchNorm1d default


def _round_up(x, m):
    return (x + m - 1) // m * m


def _hidden_kernel(x_ref, w1_ref, b1_ref, h_ref, *, inv_len):
    """h = (sum_l E[token_l]) @ W1 * (1/L) + b1 for one batch tile."""
    h = jnp.dot(x_ref[...], w1_ref[...], preferred_element_type=jnp.float32)
    # 1/L applied to the smaller (b_tile, H_pad) matmul result.
    h_ref[...] = h * inv_len + b1_ref[...]


def _output_kernel(h_ref, scale_ref, shift_ref, w2_ref, b2_ref, out_ref):
    """out = relu(h * scale + shift) @ W2 + b2 for one batch tile (BN folded to FMA)."""
    hn = jnp.maximum(h_ref[...] * scale_ref[...] + shift_ref[...], 0.0)
    out_ref[...] = (
        jnp.dot(hn.astype(w2_ref.dtype), w2_ref[...],
                preferred_element_type=jnp.float32) + b2_ref[...]
    )


def fasttext_forward(tokens, table, w1, b1, gamma, beta, w2, b2,
                     *, matmul_dtype=jnp.float32, b_tile=512):
    """tokens: (B, L) int32; table: (V, E); w1: (E, H); w2: (H, C)  (weights stored (in, out))."""
    B, L = tokens.shape
    V, E = table.shape
    H = w1.shape[1]
    C = w2.shape[1]

    H_pad = _round_up(H, 128)
    C_pad = _round_up(C, 128)
    b_tile = _round_up(max(8, min(b_tile, _round_up(B, 8))), 8)
    B_pad = _round_up(B, b_tile)
    num_b_tiles = B_pad // b_tile

    # ---- JAX glue: embedding gather + sequence-SUM pooling (XLA fuses gather+reduce
    #      under jit); only the (B, E) pooled tensor reaches the kernels. ----
    # TODO(synk): fuse this gather+pool into kernel A via PrefetchScalarGridSpec.
    summed = jnp.sum(jnp.take(table, tokens, axis=0).astype(jnp.float32), axis=1)  # (B, E)
    x = summed.astype(matmul_dtype)  # NOT padded: no extra HBM pad pass

    # ---- pad only the tiny weights / biases to lane-dense shapes ----
    w1p = jnp.pad(w1.astype(jnp.float32), ((0, 0), (0, H_pad - H))).astype(matmul_dtype)
    b1p = jnp.pad(b1.reshape(1, H).astype(jnp.float32), ((0, 0), (0, H_pad - H)))
    gp = jnp.pad(gamma.reshape(1, H).astype(jnp.float32), ((0, 0), (0, H_pad - H)))
    bp = jnp.pad(beta.reshape(1, H).astype(jnp.float32), ((0, 0), (0, H_pad - H)))
    w2p = jnp.pad(w2.astype(jnp.float32), ((0, H_pad - H), (0, C_pad - C))).astype(matmul_dtype)
    b2p = jnp.pad(b2.reshape(1, C).astype(jnp.float32), ((0, 0), (0, C_pad - C)))

    # ---- kernel A: per-batch-tile hidden activations (batch axis fully parallel) ----
    h_full = pl.pallas_call(
        functools.partial(_hidden_kernel, inv_len=1.0 / L),
        out_shape=jax.ShapeDtypeStruct((B_pad, H_pad), jnp.float32),
        grid=(num_b_tiles,),
        in_specs=[
            pl.BlockSpec((b_tile, E), lambda i: (i, 0)),      # pooled embeddings (unpadded E)
            pl.BlockSpec((E, H_pad), lambda i: (0, 0)),       # W1
            pl.BlockSpec((1, H_pad), lambda i: (0, 0)),       # b1
        ],
        out_specs=pl.BlockSpec((b_tile, H_pad), lambda i: (i, 0)),
        compiler_params=pltpu.CompilerParams(
            dimension_semantics=("parallel",),
            vmem_limit_bytes=32 * 1024 * 1024,
        ),
    )(x, w1p, b1p)

    # ---- training-mode BatchNorm1d stats: centered, biased, over the TRUE batch rows.
    #      h is only (B, H_pad) f32 so this is a tiny XLA reduce; rows >= B (undefined
    #      data from the partial last input tile) are excluded by the slice. ----
    h_valid = h_full[:B]
    mu = jnp.mean(h_valid, axis=0, keepdims=True)                         # (1, H_pad)
    var = jnp.mean(jnp.square(h_valid - mu), axis=0, keepdims=True)       # biased variance
    scale = gp * jax.lax.rsqrt(var + EPS)   # gamma * rsqrt(var+eps); padded lanes -> 0
    shift = bp - mu * scale                 # beta - mu*scale

    # ---- kernel B: folded BN + ReLU + fc (batch axis fully parallel) ----
    out = pl.pallas_call(
        _output_kernel,
        out_shape=jax.ShapeDtypeStruct((B_pad, C_pad), jnp.float32),
        grid=(num_b_tiles,),
        in_specs=[
            pl.BlockSpec((b_tile, H_pad), lambda i: (i, 0)),  # cached hidden activations
            pl.BlockSpec((1, H_pad), lambda i: (0, 0)),       # folded BN scale
            pl.BlockSpec((1, H_pad), lambda i: (0, 0)),       # folded BN shift
            pl.BlockSpec((H_pad, C_pad), lambda i: (0, 0)),   # W2
            pl.BlockSpec((1, C_pad), lambda i: (0, 0)),       # b2
        ],
        out_specs=pl.BlockSpec((b_tile, C_pad), lambda i: (i, 0)),
        compiler_params=pltpu.CompilerParams(
            dimension_semantics=("parallel",),
            vmem_limit_bytes=32 * 1024 * 1024,
        ),
    )(h_full, scale, shift, w2p, b2p)

    return out[:B, :C]


def _reference(tokens, table, w1, b1, gamma, beta, w2, b2):
    """Plain-JAX re-statement of the torch forward (training-mode BatchNorm1d)."""
    embed = table[tokens]                             # (B, L, E)
    mean_embed = jnp.mean(embed, axis=1)              # (B, E)
    h = mean_embed @ w1 + b1                          # (B, H)
    mu = jnp.mean(h, axis=0)
    var = jnp.mean((h - mu) ** 2, axis=0)             # biased batch variance
    hn = (h - mu) * jax.lax.rsqrt(var + EPS) * gamma + beta
    hn = jnp.maximum(hn, 0.0)
    return hn @ w2 + b2                               # (B, C)


if __name__ == "__main__":
    # Small deterministic config: vocab=50, embed_dim=32, hidden=10, classes=5
    B, L, E, H, C, V = 8, 12, 32, 10, 5, 50

    key = jax.random.PRNGKey(0)
    k_tok, k_tab, k_w1, k_b1, k_w2, k_b2 = jax.random.split(key, 6)

    tokens = jax.random.randint(k_tok, (B, L), 0, V, dtype=jnp.int32)
    table = jax.random.normal(k_tab, (V, E), dtype=jnp.float32)

    w1 = jax.random.normal(k_w1, (E, H), dtype=jnp.float32) * 0.1
    b1 = jax.random.normal(k_b1, (H,), dtype=jnp.float32) * 0.1
    gamma = jnp.ones((H,), dtype=jnp.float32)    # BatchNorm1d default weight
    beta = jnp.zeros((H,), dtype=jnp.float32)    # BatchNorm1d default bias
    w2 = jax.random.normal(k_w2, (H, C), dtype=jnp.float32) * 0.1
    b2 = jax.random.normal(k_b2, (C,), dtype=jnp.float32) * 0.1

    out = jax.jit(fasttext_forward)(tokens, table, w1, b1, gamma, beta, w2, b2)
    out = jax.block_until_ready(out)

    ref = _reference(tokens, table, w1, b1, gamma, beta, w2, b2)
    assert out.shape == (B, C) and out.dtype == jnp.float32
    assert jnp.allclose(out, ref, atol=1e-4, rtol=1e-4), (out, ref)
    print("KERNEL_OK")
</pallas_src>

<mosaic_0001>
module attributes {stable_mosaic.version = 11 : i64} {
  func.func @_hidden_kernel(%arg0: i32, %arg1: memref<8x32xf32, #tpu.memory_space<vmem>>, %arg2: memref<32x128xf32, #tpu.memory_space<vmem>>, %arg3: memref<1x128xf32, #tpu.memory_space<vmem>>, %arg4: memref<8x128xf32, #tpu.memory_space<vmem>>) attributes {dimension_semantics = [#tpu.dimension_semantics<parallel>], iteration_bounds = array<i64: 1>, scalar_prefetch = 0 : i64, scratch_operands = 0 : i64, tpu.core_type = #tpu.core_type<tc>, window_params = [{transform_indices = @transform_0, window_bounds = array<i64: 8, 32>}, {pipeline_mode = #tpu.pipeline_mode<synchronous>, transform_indices = @transform_1, window_bounds = array<i64: 32, 128>}, {pipeline_mode = #tpu.pipeline_mode<synchronous>, transform_indices = @transform_2, window_bounds = array<i64: 1, 128>}, {transform_indices = @transform_3, window_bounds = array<i64: 8, 128>}]} {
    %c0 = arith.constant 0 : index
    %c0_0 = arith.constant 0 : index
    %0 = vector.load %arg1[%c0, %c0_0] : memref<8x32xf32, #tpu.memory_space<vmem>>, vector<8x32xf32>
    %c0_1 = arith.constant 0 : index
    %c0_2 = arith.constant 0 : index
    %1 = vector.load %arg2[%c0_1, %c0_2] : memref<32x128xf32, #tpu.memory_space<vmem>>, vector<32x128xf32>
    %cst = arith.constant dense<0.000000e+00> : vector<8x128xf32>
    %2 = tpu.matmul %0, %1, %cst {dimension_numbers = #tpu.dot_dimension_numbers<[1], [0], [0], [1], [0, 0, 1, 1], [], []>} : vector<8x32xf32>, vector<32x128xf32>, vector<8x128xf32> -> vector<8x128xf32>
    %cst_3 = arith.constant 0.0833333358 : f32
    %3 = vector.broadcast %cst_3 : f32 to vector<8x128xf32>
    %4 = arith.mulf %2, %3 : vector<8x128xf32>
    %c0_4 = arith.constant 0 : index
    %c0_5 = arith.constant 0 : index
    %5 = vector.load %arg3[%c0_4, %c0_5] : memref<1x128xf32, #tpu.memory_space<vmem>>, vector<1x128xf32>
    %6 = vector.broadcast %5 : vector<1x128xf32> to vector<8x128xf32>
    %7 = arith.addf %4, %6 : vector<8x128xf32>
    %c0_6 = arith.constant 0 : index
    %c0_7 = arith.constant 0 : index
    %8 = vector.load %arg4[%c0_6, %c0_7] : memref<8x128xf32, #tpu.memory_space<vmem>>, vector<8x128xf32>
    tpu.vector_store %arg4[%c0_6, %c0_7], %7 {strides = array<i32>} : memref<8x128xf32, #tpu.memory_space<vmem>>, vector<8x128xf32>,
    return
  }
  func.func @transform_0(%arg0: i32) -> (i32, i32) {
    %c0_i32 = arith.constant 0 : i32
    %c0_i32_0 = arith.constant 0 : i32
    return %arg0, %c0_i32 : i32, i32
  }
  func.func @transform_1(%arg0: i32) -> (i32, i32) {
    %c0_i32 = arith.constant 0 : i32
    %c0_i32_0 = arith.constant 0 : i32
    %c0_i32_1 = arith.constant 0 : i32
    return %c0_i32, %c0_i32_0 : i32, i32
  }
  func.func @transform_2(%arg0: i32) -> (i32, i32) {
    %c0_i32 = arith.constant 0 : i32
    %c0_i32_0 = arith.constant 0 : i32
    %c0_i32_1 = arith.constant 0 : i32
    return %c0_i32, %c0_i32_0 : i32, i32
  }
  func.func @transform_3(%arg0: i32) -> (i32, i32) {
    %c0_i32 = arith.constant 0 : i32
    %c0_i32_0 = arith.constant 0 : i32
    return %arg0, %c0_i32 : i32, i32
  }
}

module attributes {stable_mosaic.version = 11 : i64} {
  func.func @_output_kernel(%arg0: i32, %arg1: memref<8x128xf32, #tpu.memory_space<vmem>>, %arg2: memref<1x128xf32, #tpu.memory_space<vmem>>, %arg3: memref<1x128xf32, #tpu.memory_space<vmem>>, %arg4: memref<128x128xf32, #tpu.memory_space<vmem>>, %arg5: memref<1x128xf32, #tpu.memory_space<vmem>>, %arg6: memref<8x128xf32, #tpu.memory_space<vmem>>) attributes {dimension_semantics = [#tpu.dimension_semantics<parallel>], iteration_bounds = array<i64: 1>, scalar_prefetch = 0 : i64, scratch_operands = 0 : i64, tpu.core_type = #tpu.core_type<tc>, window_params = [{transform_indices = @transform_0, window_bounds = array<i64: 8, 128>}, {pipeline_mode = #tpu.pipeline_mode<synchronous>, transform_indices = @transform_1, window_bounds = array<i64: 1, 128>}, {pipeline_mode = #tpu.pipeline_mode<synchronous>, transform_indices = @transform_2, window_bounds = array<i64: 1, 128>}, {pipeline_mode = #tpu.pipeline_mode<synchronous>, transform_indices = @transform_3, window_bounds = array<i64: 128, 128>}, {pipeline_mode = #tpu.pipeline_mode<synchronous>, transform_indices = @transform_4, window_bounds = array<i64: 1, 128>}, {transform_indices = @transform_5, window_bounds = array<i64: 8, 128>}]} {
    %c0 = arith.constant 0 : index
    %c0_0 = arith.constant 0 : index
    %0 = vector.load %arg1[%c0, %c0_0] : memref<8x128xf32, #tpu.memory_space<vmem>>, vector<8x128xf32>
    %c0_1 = arith.constant 0 : index
    %c0_2 = arith.constant 0 : index
    %1 = vector.load %arg2[%c0_1, %c0_2] : memref<1x128xf32, #tpu.memory_space<vmem>>, vector<1x128xf32>
    %2 = vector.broadcast %1 : vector<1x128xf32> to vector<8x128xf32>
    %3 = arith.mulf %0, %2 : vector<8x128xf32>
    %c0_3 = arith.constant 0 : index
    %c0_4 = arith.constant 0 : index
    %4 = vector.load %arg3[%c0_3, %c0_4] : memref<1x128xf32, #tpu.memory_space<vmem>>, vector<1x128xf32>
    %5 = vector.broadcast %4 : vector<1x128xf32> to vector<8x128xf32>
    %6 = arith.addf %3, %5 : vector<8x128xf32>
    %cst = arith.constant 0.000000e+00 : f32
    %7 = vector.broadcast %cst : f32 to vector<8x128xf32>
    %8 = arith.maximumf %6, %7 : vector<8x128xf32>
    %c0_5 = arith.constant 0 : index
    %c0_6 = arith.constant 0 : index
    %9 = vector.load %arg4[%c0_5, %c0_6] : memref<128x128xf32, #tpu.memory_space<vmem>>, vector<128x128xf32>
    %cst_7 = arith.constant dense<0.000000e+00> : vector<8x128xf32>
    %10 = tpu.matmul %8, %9, %cst_7 {dimension_numbers = #tpu.dot_dimension_numbers<[1], [0], [0], [1], [0, 0, 1, 1], [], []>} : vector<8x128xf32>, vector<128x128xf32>, vector<8x128xf32> -> vector<8x128xf32>
    %c0_8 = arith.constant 0 : index
    %c0_9 = arith.constant 0 : index
    %11 = vector.load %arg5[%c0_8, %c0_9] : memref<1x128xf32, #tpu.memory_space<vmem>>, vector<1x128xf32>
    %12 = vector.broadcast %11 : vector<1x128xf32> to vector<8x128xf32>
    %13 = arith.addf %10, %12 : vector<8x128xf32>
    %c0_10 = arith.constant 0 : index
    %c0_11 = arith.constant 0 : index
    %14 = vector.load %arg6[%c0_10, %c0_11] : memref<8x128xf32, #tpu.memory_space<vmem>>, vector<8x128xf32>
    tpu.vector_store %arg6[%c0_10, %c0_11], %13 {strides = array<i32>} : memref<8x128xf32, #tpu.memory_space<vmem>>, vector<8x128xf32>,
    return
  }
  func.func @transform_0(%arg0: i32) -> (i32, i32) {
    %c0_i32 = arith.constant 0 : i32
    %c0_i32_0 = arith.constant 0 : i32
    return %arg0, %c0_i32 : i32, i32
  }
  func.func @transform_1(%arg0: i32) -> (i32, i32) {
    %c0_i32 = arith.constant 0 : i32
    %c0_i32_0 = arith.constant 0 : i32
    %c0_i32_1 = arith.constant 0 : i32
    return %c0_i32, %c0_i32_0 : i32, i32
  }
  func.func @transform_2(%arg0: i32) -> (i32, i32) {
    %c0_i32 = arith.constant 0 : i32
    %c0_i32_0 = arith.constant 0 : i32
    %c0_i32_1 = arith.constant 0 : i32
    return %c0_i32, %c0_i32_0 : i32, i32
  }
  func.func @transform_3(%arg0: i32) -> (i32, i32) {
    %c0_i32 = arith.constant 0 : i32
    %c0_i32_0 = arith.constant 0 : i32
    %c0_i32_1 = arith.constant 0 : i32
    return %c0_i32, %c0_i32_0 : i32, i32
  }
  func.func @transform_4(%arg0: i32) -> (i32, i32) {
    %c0_i32 = arith.constant 0 : i32
    %c0_i32_0 = arith.constant 0 : i32
    %c0_i32_1 = arith.constant 0 : i32
    return %c0_i32, %c0_i32_0 : i32, i32
  }
  func.func @transform_5(%arg0: i32) -> (i32, i32) {
    %c0_i32 = arith.constant 0 : i32
    %c0_i32_0 = arith.constant 0 : i32
    return %arg0, %c0_i32 : i32, i32
  }
}

</mosaic_0001>

<llo_original>
// kernel: fasttext_forward.3
$region0: #{fasttext_forward.3}
  #allocation0 [shape = 'u32[]', space=smem, size = 0x4, offset = 0x4, fixed_abs, tag = 'smem constant byte address 0x4 - core index']
  #allocation1 [shape = 'u32[144,128]{1,0:T(1,128)}', space=vmem, size = 0x12000, scoped, tag = 'internal scratch']
  %s0 = inlined_call_operand.vmem [shape: f32[8,128], index: 0, kind: input, shape index: {}]
  %s1 = inlined_call_operand.vmem [shape: f32[1,128], index: 1, kind: input, shape index: {}]
  %s2 = inlined_call_operand.vmem [shape: f32[1,128], index: 2, kind: input, shape index: {}]
  %s3 = inlined_call_operand.vmem [shape: f32[128,128], index: 3, kind: input, shape index: {}]
  %s4 = inlined_call_operand.vmem [shape: f32[1,128], index: 4, kind: input, shape index: {}]
  %s5 = inlined_call_operand.hbm [shape: f32[8,128], index: 5, kind: output, shape index: {}]
  %s6 = sld [smem:[#allocation0]]
  $region30: #{fasttext_forward.3} parent=0
    _
  %s8 = ssub.s32 1, %s6
  %s9 = scalar_select 0, %s8, %s6
  $region1: #{fasttext_forward.3} parent=0
    #allocation2 [shape = 'u8[4096]{0}', space=vmem, size = 0x1000, scoped, tag = 'output window, operand 0, single buffered']
    #allocation3 [shape = 's32[1]{0}', space=sflag, size = 0x4, scoped, tag = 'scoped memory for fasttext_forward.3']
    %10 = vsyncpa [#allocation3], 0
    // Predicated region
    $region2: #{fasttext_forward.3} parent=1 // pred_check
      _
    $region3: #{fasttext_forward.3} parent=1 // pred_check_branch
      %12 = sbr.rel (0) target = $region5
    $region4: #{fasttext_forward.3} parent=1 // pred_region
      _
    $region5: #{fasttext_forward.3} parent=1 // pred_fallthru
      _
    // Predicated region
    $region6: #{fasttext_forward.3} parent=1 // pred_check
      _
    $region7: #{fasttext_forward.3} parent=1 // pred_check_branch
      %14 = sbr.rel (0) target = $region9
    $region8: #{fasttext_forward.3} parent=1 // pred_region
      _
    $region9: #{fasttext_forward.3} parent=1 // pred_fallthru
      _
    // Predicated region
    $region10: #{fasttext_forward.3} parent=1 // pred_check
      _
    $region11: #{fasttext_forward.3} parent=1 // pred_check_branch
      %16 = sbr.rel (0) target = $region13
    $region12: #{fasttext_forward.3} parent=1 // pred_region
      _
    $region13: #{fasttext_forward.3} parent=1 // pred_fallthru
      _
    // Predicated region
    $region14: #{fasttext_forward.3} parent=1 // pred_check
      _
    $region15: #{fasttext_forward.3} parent=1 // pred_check_branch
      %18 = sbr.rel (0) target = $region17
    $region16: #{fasttext_forward.3} parent=1 // pred_region
      _
    $region17: #{fasttext_forward.3} parent=1 // pred_fallthru
      _
    // Predicated region
    $region18: #{fasttext_forward.3} parent=1 // pred_check
      _
    $region19: #{fasttext_forward.3} parent=1 // pred_check_branch
      %20 = sbr.rel (0) target = $region21
    $region20: #{fasttext_forward.3} parent=1 // pred_region
      _
    $region21: #{fasttext_forward.3} parent=1 // pred_fallthru
      _
    %v21 = vld [vmem:[%s0] sm:$0xff]
    %v22 = vld [vmem:[%s1] sm:$0x1]
    %v24 = vlaneseq
    %v25 = vshrl.u32 %v24, 7
    %v26 = vsub.s32 0, %v25
    %v27 = vrot.slane %v22, %v26
    %v29 = vmul.f32 %v21, %v27
    %v30 = vld [vmem:[%s2] sm:$0x1]
    %v32 = vlaneseq
    %v33 = vshrl.u32 %v32, 7
    %v34 = vsub.s32 0, %v33
    %v35 = vrot.slane %v30, %v34
    %v37 = vadd.f32 %v29, %v35
    %v38 = vmax.f32 %v37, 0.0
    %v39 = vld [vmem:[%s3] sm:$0xff]
    %v40 = vld [vmem:[%s3 + $0x8] sm:$0xff]
    %v41 = vld [vmem:[%s3 + $0x10] sm:$0xff]
    %v42 = vld [vmem:[%s3 + $0x18] sm:$0xff]
    %v43 = vld [vmem:[%s3 + $0x20] sm:$0xff]
    %v44 = vld [vmem:[%s3 + $0x28] sm:$0xff]
    %v45 = vld [vmem:[%s3 + $0x30] sm:$0xff]
    %v46 = vld [vmem:[%s3 + $0x38] sm:$0xff]
    %v47 = vld [vmem:[%s3 + $0x40] sm:$0xff]
    %v48 = vld [vmem:[%s3 + $0x48] sm:$0xff]
    %v49 = vld [vmem:[%s3 + $0x50] sm:$0xff]
    %v50 = vld [vmem:[%s3 + $0x58] sm:$0xff]
    %v51 = vld [vmem:[%s3 + $0x60] sm:$0xff]
    %v52 = vld [vmem:[%s3 + $0x68] sm:$0xff]
    %v53 = vld [vmem:[%s3 + $0x70] sm:$0xff]
    %v54 = vld [vmem:[%s3 + $0x78] sm:$0xff]
    %v55 = vld [vmem:[%s4] sm:$0x1]
    %v57 = vlaneseq
    %v58 = vshrl.u32 %v57, 7
    %v59 = vsub.s32 0, %v58
    %v60 = vrot.slane %v55, %v59
    %62 = vmatprep.subr.mxu0 0.0
    %63 = vmatpush1.msra.mxu0 %v39
    %64 = vmatprep.subr.mxu0 0.0
    %65 = vmatpush1.msra.mxu0 %v40
    %66 = vmatprep.subr.mxu0 0.0
    %67 = vmatpush1.msra.mxu0 %v41
    %68 = vmatprep.subr.mxu0 0.0
    %69 = vmatpush1.msra.mxu0 %v42
    %70 = vmatprep.subr.mxu0 0.0
    %71 = vmatpush1.msra.mxu0 %v43
    %72 = vmatprep.subr.mxu0 0.0
    %73 = vmatpush1.msra.mxu0 %v44
    %74 = vmatprep.subr.mxu0 0.0
    %75 = vmatpush1.msra.mxu0 %v45
    %76 = vmatprep.subr.mxu0 0.0
    %77 = vmatpush1.msra.mxu0 %v46
    %78 = vmatprep.subr.mxu0 0.0
    %79 = vmatpush1.msra.mxu0 %v47
    %80 = vmatprep.subr.mxu0 0.0
    %81 = vmatpush1.msra.mxu0 %v48
    %82 = vmatprep.subr.mxu0 0.0
    %83 = vmatpush1.msra.mxu0 %v49
    %84 = vmatprep.subr.mxu0 0.0
    %85 = vmatpush1.msra.mxu0 %v50
    %86 = vmatprep.subr.mxu0 0.0
    %87 = vmatpush1.msra.mxu0 %v51
    %88 = vmatprep.subr.mxu0 0.0
    %89 = vmatpush1.msra.mxu0 %v52
    %90 = vmatprep.subr.mxu0 0.0
    %91 = vmatpush1.msra.mxu0 %v53
    %92 = vmatprep.subr.mxu0 0.0
    %93 = vmatpush1.msra.mxu0 %v54
    %94 = vmatprep.subr.mxu0 0.0
    %95 = vmatpush1.msra.mxu0 0.0
    %96 = vmatprep.subr.mxu0 0.0
    %97 = vmatpush1.msra.mxu0 0.0
    %98 = vmatprep.subr.mxu0 0.0
    %99 = vmatpush1.msra.mxu0 0.0
    %100 = vmatprep.subr.mxu0 0.0
    %101 = vmatpush1.msra.mxu0 0.0
    %102 = vmatprep.subr.mxu0 0.0
    %103 = vmatpush1.msra.mxu0 0.0
    %104 = vmatprep.subr.mxu0 0.0
    %105 = vmatpush1.msra.mxu0 0.0
    %106 = vmatprep.subr.mxu0 0.0
    %107 = vmatpush1.msra.mxu0 0.0
    %108 = vmatprep.subr.mxu0 0.0
    %109 = vmatpush1.msra.mxu0 0.0
    %110 = vmatprep.subr.mxu0 0.0
    %111 = vmatpush1.msra.mxu0 0.0
    %112 = vmatprep.subr.mxu0 0.0
    %113 = vmatpush1.msra.mxu0 0.0
    %114 = vmatprep.subr.mxu0 0.0
    %115 = vmatpush1.msra.mxu0 0.0
    %116 = vmatprep.subr.mxu0 0.0
    %117 = vmatpush1.msra.mxu0 0.0
    %118 = vmatprep.subr.mxu0 0.0
    %119 = vmatpush1.msra.mxu0 0.0
    %120 = vmatprep.subr.mxu0 0.0
    %121 = vmatpush1.msra.mxu0 0.0
    %122 = vmatprep.subr.mxu0 0.0
    %123 = vmatpush1.msra.mxu0 0.0
    %124 = vmatprep.subr.mxu0 0.0
    %125 = vmatpush1.msra.mxu0 0.0
    %126 = vmatprep.mubr.f32.mxu0 0.0
    %127 = vmatmul.mubr.f32.gmra.mrb[0].mxu0 %v38
    %v128 = vpop.f32.mrb[0].mxu0
    %v129 = vadd.f32 %v60, %v128
    %v130 = vpop.f32.mrb[0].mxu0
    %131 = vdwg.mxu0
    %132 = vst [vmem:[#allocation2] sm:$0xff] %v129
    // Predicated region
    $region22: #{fasttext_forward.3} parent=1 // pred_check
      _
    $region23: #{fasttext_forward.3} parent=1 // pred_check_branch
      %134 = sbr.rel (0) target = $region25
    $region24: #{fasttext_forward.3} parent=1 // pred_region
      %s136 = ssub.s32 128, 128
      %137 = vsyncadd [#allocation3], %s136
      %s139 = sshll.u32 [#allocation2], 4
      %s140 = int_to_ptr.vmem [resolvable:$true] %s139
      %142 = dma.vmem_to_hbm [thread:$0]  %s140, 128, %s5, [#allocation3]
    $region25: #{fasttext_forward.3} parent=1 // pred_fallthru
      _
    // Predicated region
    $region26: #{fasttext_forward.3} parent=1 // pred_check
      _
    $region27: #{fasttext_forward.3} parent=1 // pred_check_branch
      %144 = sbr.rel (0) target = $region29
    $region28: #{fasttext_forward.3} parent=1 // pred_region
      %145 = dma.done [#allocation3], 128
    $region29: #{fasttext_forward.3} parent=1 // pred_fallthru
      _
    %146 = vsyncpa [#allocation3], 1

// kernel: fasttext_forward.2
$region0: #{fasttext_forward.2}
  #allocation0 [shape = 'u32[]', space=smem, size = 0x4, offset = 0x4, fixed_abs, tag = 'smem constant byte address 0x4 - core index']
  #allocation1 [shape = 'u32[144,128]{1,0:T(1,128)}', space=vmem, size = 0x12000, scoped, tag = 'internal scratch']
  %s0 = inlined_call_operand.vmem [shape: f32[8,32], index: 0, kind: input, shape index: {}]
  %s1 = inlined_call_operand.vmem [shape: f32[32,128], index: 1, kind: input, shape index: {}]
  %s2 = inlined_call_operand.vmem [shape: f32[1,128], index: 2, kind: input, shape index: {}]
  %s3 = inlined_call_operand.vmem [shape: f32[8,128], index: 3, kind: output, shape index: {}]
  %s4 = sld [smem:[#allocation0]]
  $region22: #{fasttext_forward.2} parent=0
    _
  %s6 = ssub.s32 1, %s4
  %s7 = scalar_select 0, %s6, %s4
  // Predicated region
  $region2: #{fasttext_forward.2} parent=0 // pred_check
    _
  $region3: #{fasttext_forward.2} parent=0 // pred_check_branch
    %9 = sbr.rel (0) target = $region5
  $region4: #{fasttext_forward.2} parent=0 // pred_region
    _
  $region5: #{fasttext_forward.2} parent=0 // pred_fallthru
    _
  // Predicated region
  $region6: #{fasttext_forward.2} parent=0 // pred_check
    _
  $region7: #{fasttext_forward.2} parent=0 // pred_check_branch
    %11 = sbr.rel (0) target = $region9
  $region8: #{fasttext_forward.2} parent=0 // pred_region
    _
  $region9: #{fasttext_forward.2} parent=0 // pred_fallthru
    _
  // Predicated region
  $region10: #{fasttext_forward.2} parent=0 // pred_check
    _
  $region11: #{fasttext_forward.2} parent=0 // pred_check_branch
    %13 = sbr.rel (0) target = $region13
  $region12: #{fasttext_forward.2} parent=0 // pred_region
    _
  $region13: #{fasttext_forward.2} parent=0 // pred_fallthru
    _
  %v14 = vld [vmem:[%s0] sm:$0xff]
  %v15 = vld [vmem:[%s1] sm:$0xff]
  %v16 = vld [vmem:[%s1 + $0x8] sm:$0xff]
  %v17 = vld [vmem:[%s1 + $0x10] sm:$0xff]
  %v18 = vld [vmem:[%s1 + $0x18] sm:$0xff]
  %vm19 = vcmask 261120
  %v21 = vsel %vm19, %v14, 0
  %23 = vmatprep.subr.mxu0 0.0
  %24 = vmatpush1.msra.mxu0 %v15
  %25 = vmatprep.subr.mxu0 0.0
  %26 = vmatpush1.msra.mxu0 %v16
  %27 = vmatprep.subr.mxu0 0.0
  %28 = vmatpush1.msra.mxu0 %v17
  %29 = vmatprep.subr.mxu0 0.0
  %30 = vmatpush1.msra.mxu0 %v18
  %31 = vmatprep.subr.mxu0 0.0
  %32 = vmatpush1.msra.mxu0 0.0
  %33 = vmatprep.subr.mxu0 0.0
  %34 = vmatpush1.msra.mxu0 0.0
  %35 = vmatprep.subr.mxu0 0.0
  %36 = vmatpush1.msra.mxu0 0.0
  %37 = vmatprep.subr.mxu0 0.0
  %38 = vmatpush1.msra.mxu0 0.0
  %39 = vmatprep.subr.mxu0 0.0
  %40 = vmatpush1.msra.mxu0 0.0
  %41 = vmatprep.subr.mxu0 0.0
  %42 = vmatpush1.msra.mxu0 0.0
  %43 = vmatprep.subr.mxu0 0.0
  %44 = vmatpush1.msra.mxu0 0.0
  %45 = vmatprep.subr.mxu0 0.0
  %46 = vmatpush1.msra.mxu0 0.0
  %47 = vmatprep.subr.mxu0 0.0
  %48 = vmatpush1.msra.mxu0 0.0
  %49 = vmatprep.subr.mxu0 0.0
  %50 = vmatpush1.msra.mxu0 0.0
  %51 = vmatprep.subr.mxu0 0.0
  %52 = vmatpush1.msra.mxu0 0.0
  %53 = vmatprep.subr.mxu0 0.0
  %54 = vmatpush1.msra.mxu0 0.0
  %55 = vmatprep.subr.mxu0 0.0
  %56 = vmatpush1.msra.mxu0 0.0
  %57 = vmatprep.subr.mxu0 0.0
  %58 = vmatpush1.msra.mxu0 0.0
  %59 = vmatprep.subr.mxu0 0.0
  %60 = vmatpush1.msra.mxu0 0.0
  %61 = vmatprep.subr.mxu0 0.0
  %62 = vmatpush1.msra.mxu0 0.0
  %63 = vmatprep.subr.mxu0 0.0
  %64 = vmatpush1.msra.mxu0 0.0
  %65 = vmatprep.subr.mxu0 0.0
  %66 = vmatpush1.msra.mxu0 0.0
  %67 = vmatprep.subr.mxu0 0.0
  %68 = vmatpush1.msra.mxu0 0.0
  %69 = vmatprep.subr.mxu0 0.0
  %70 = vmatpush1.msra.mxu0 0.0
  %71 = vmatprep.subr.mxu0 0.0
  %72 = vmatpush1.msra.mxu0 0.0
  %73 = vmatprep.subr.mxu0 0.0
  %74 = vmatpush1.msra.mxu0 0.0
  %75 = vmatprep.subr.mxu0 0.0
  %76 = vmatpush1.msra.mxu0 0.0
  %77 = vmatprep.subr.mxu0 0.0
  %78 = vmatpush1.msra.mxu0 0.0
  %79 = vmatprep.subr.mxu0 0.0
  %80 = vmatpush1.msra.mxu0 0.0
  %81 = vmatprep.subr.mxu0 0.0
  %82 = vmatpush1.msra.mxu0 0.0
  %83 = vmatprep.subr.mxu0 0.0
  %84 = vmatpush1.msra.mxu0 0.0
  %85 = vmatprep.subr.mxu0 0.0
  %86 = vmatpush1.msra.mxu0 0.0
  %87 = vmatprep.mubr.f32.mxu0 0.0
  %88 = vmatmul.mubr.f32.gmra.mrb[0].mxu0 %v21
  %v89 = vpop.f32.mrb[0].mxu0
  %v90 = vadd.f32 0.0, %v89
  %v91 = vpop.f32.mrb[0].mxu0
  %92 = vdwg.mxu0
  %v93 = vmul.f32 %v90, 0.083333336
  %v94 = vld [vmem:[%s2] sm:$0x1]
  %v96 = vlaneseq
  %v97 = vshrl.u32 %v96, 7
  %v98 = vsub.s32 0, %v97
  %v99 = vrot.slane %v94, %v98
  %v101 = vadd.f32 %v93, %v99
  %102 = vst [vmem:[%s3] sm:$0xff] %v101
  // Predicated region
  $region14: #{fasttext_forward.2} parent=0 // pred_check
    _
  $region15: #{fasttext_forward.2} parent=0 // pred_check_branch
    %104 = sbr.rel (0) target = $region17
  $region16: #{fasttext_forward.2} parent=0 // pred_region
    _
  $region17: #{fasttext_forward.2} parent=0 // pred_fallthru
    _
  // Predicated region
  $region18: #{fasttext_forward.2} parent=0 // pred_check
    _
  $region19: #{fasttext_forward.2} parent=0 // pred_check_branch
    %106 = sbr.rel (0) target = $region21
  $region20: #{fasttext_forward.2} parent=0 // pred_region
    _
  $region21: #{fasttext_forward.2} parent=0 // pred_fallthru
    _

</llo_original>
